<compile_context>
chip_gen: v6e
topology: v6e:2x2x1
jax: 0.10.0
libtpu: 0.0.40
codegen_flags: <defaults>
</compile_context>

<pallas_src>
import functools

import jax
import jax.numpy as jnp
from jax.experimental import pallas as pl
from jax.experimental.pallas import tpu as pltpu

HIDDEN = 100
HIDDEN_PAD = 128       # zero-padded hidden width (lane-aligned, exact)
IN_FEATURES = 2
OUT_FEATURES = 4
OUT_PAD = 128          # lane-dense output width
DEFAULT_TILE_N = 4096  # max rows per grid step


def _round_up(n, m):
    return ((n + m - 1) // m) * m


def _cdiv(a, b):
    return -(-a // b)


def _act_dtype_for_device():
    """bf16 tanh on v6e/v7x (bf16 EUP); f32 elsewhere (v5e & older are f32-only)."""
    try:
        kind = jax.devices()[0].device_kind.lower()
    except Exception:
        return jnp.float32
    if ("v6" in kind) or ("v7" in kind):
        return jnp.bfloat16
    return jnp.float32


def _choose_tiling(n, tile_n_max):
    """Balanced 16-row-aligned tiles; even step count >= 2 for larger batches."""
    num_tiles = max(1, _cdiv(n, tile_n_max))
    if n > 512:
        num_tiles = max(num_tiles, 2)        # let v7x use both TensorCores
    if num_tiles > 1 and num_tiles % 2:
        num_tiles += 1                       # even split across 2 cores
    tile_n = _round_up(_cdiv(n, num_tiles), 16)
    n_pad = num_tiles * tile_n
    return tile_n, num_tiles, n_pad


def _mlp_kernel(xt_ref,
                w1_ref, b1_ref,
                w2_ref, b2_ref,
                w3_ref, b3_ref,
                w4_ref, b4_ref,
                o_ref, *, act_dtype):
    mm = jnp.bfloat16  # MXU operand dtype for the 128x128 layers

    # Layer 1: K=2 MXU dot in f32 (preserves raw-input precision, MXU is idle).
    h = jnp.tanh(
        (jnp.dot(xt_ref[...], w1_ref[...],
                 preferred_element_type=jnp.float32) + b1_ref[...]
         ).astype(act_dtype))

    # Layers 2-3: bf16 MXU operands, f32 accumulate, bias add, tanh in act_dtype.
    h = jnp.tanh(
        (jnp.dot(h.astype(mm), w2_ref[...],
                 preferred_element_type=jnp.float32) + b2_ref[...]
         ).astype(act_dtype))
    h = jnp.tanh(
        (jnp.dot(h.astype(mm), w3_ref[...],
                 preferred_element_type=jnp.float32) + b3_ref[...]
         ).astype(act_dtype))

    # Layer 4: Linear(100, 4) zero-padded to 128 lanes -> lane-dense f32 store.
    out = jnp.dot(h.astype(mm), w4_ref[...],
                  preferred_element_type=jnp.float32) + b4_ref[...]
    o_ref[...] = out.astype(o_ref.dtype)


def angiogenesis_pinn_forward(x, t, params, *, tile_n_max=DEFAULT_TILE_N):
    """Forward pass of AngiogenesisPINN: net(cat([x, t], dim=1)).

    x, t: (N, 1) float32.  Returns (N, 4) float32 with columns [C, P, I, F].
    """
    (w1, b1), (w2, b2), (w3, b3), (w4, b4) = params
    n = x.shape[0]

    # Single (N, 2) input block (layer-1 concat done host-side: 8 B/row).
    xt = jnp.concatenate([x.astype(jnp.float32), t.astype(jnp.float32)], axis=1)

    tile_n, num_tiles, n_pad = _choose_tiling(n, tile_n_max)
    if n_pad != n:
        xt = jnp.pad(xt, ((0, n_pad - n), (0, 0)))

    # Zero-pad hidden width 100 -> 128 (exact) and output 4 -> 128 (lane-dense).
    w1p = jnp.zeros((IN_FEATURES, HIDDEN_PAD), jnp.float32).at[:, :HIDDEN].set(
        w1.astype(jnp.float32))
    b1p = jnp.zeros((1, HIDDEN_PAD), jnp.float32).at[:, :HIDDEN].set(
        b1.astype(jnp.float32).reshape(1, HIDDEN))
    w2p = jnp.zeros((HIDDEN_PAD, HIDDEN_PAD), jnp.bfloat16).at[:HIDDEN, :HIDDEN].set(
        w2.astype(jnp.bfloat16))
    b2p = jnp.zeros((1, HIDDEN_PAD), jnp.float32).at[:, :HIDDEN].set(
        b2.astype(jnp.float32).reshape(1, HIDDEN))
    w3p = jnp.zeros((HIDDEN_PAD, HIDDEN_PAD), jnp.bfloat16).at[:HIDDEN, :HIDDEN].set(
        w3.astype(jnp.bfloat16))
    b3p = jnp.zeros((1, HIDDEN_PAD), jnp.float32).at[:, :HIDDEN].set(
        b3.astype(jnp.float32).reshape(1, HIDDEN))
    w4p = jnp.zeros((HIDDEN_PAD, OUT_PAD), jnp.bfloat16).at[:HIDDEN, :OUT_FEATURES].set(
        w4.astype(jnp.bfloat16))
    b4p = jnp.zeros((1, OUT_PAD), jnp.float32).at[:, :OUT_FEATURES].set(
        b4.astype(jnp.float32).reshape(1, OUT_FEATURES))

    batch_in_spec = pl.BlockSpec((tile_n, IN_FEATURES), lambda i: (i, 0))
    batch_out_spec = pl.BlockSpec((tile_n, OUT_PAD), lambda i: (i, 0))

    def resident(a):  # full-shape block, constant index_map -> stays in VMEM
        return pl.BlockSpec(a.shape, lambda i: (0,) * a.ndim)

    kernel = functools.partial(_mlp_kernel, act_dtype=_act_dtype_for_device())

    out = pl.pallas_call(
        kernel,
        out_shape=jax.ShapeDtypeStruct((n_pad, OUT_PAD), jnp.float32),
        grid=(num_tiles,),
        in_specs=[batch_in_spec,
                  resident(w1p), resident(b1p),
                  resident(w2p), resident(b2p),
                  resident(w3p), resident(b3p),
                  resident(w4p), resident(b4p)],
        out_specs=batch_out_spec,
        compiler_params=pltpu.CompilerParams(
            dimension_semantics=("parallel",),
            vmem_limit_bytes=40 * 1024 * 1024),
    )(xt, w1p, b1p, w2p, b2p, w3p, b3p, w4p, b4p)

    return out[:n, :OUT_FEATURES]


def init_params(key):
    """nn.Linear-style init; weights stored as (in, out) so the kernel does x@W+b."""
    dims = [(IN_FEATURES, HIDDEN), (HIDDEN, HIDDEN), (HIDDEN, HIDDEN),
            (HIDDEN, OUT_FEATURES)]
    params = []
    for fan_in, fan_out in dims:
        key, kw, kb = jax.random.split(key, 3)
        bound = 1.0 / jnp.sqrt(jnp.float32(fan_in))
        w = jax.random.uniform(kw, (fan_in, fan_out), jnp.float32, -bound, bound)
        b = jax.random.uniform(kb, (1, fan_out), jnp.float32, -bound, bound)
        params.append((w, b))
    return params


def reference_forward(x, t, params):
    """Pure-JAX f32 reference (matches the PyTorch module's forward)."""
    xt = jnp.concatenate([x, t], axis=1)
    (w1, b1), (w2, b2), (w3, b3), (w4, b4) = params
    h = jnp.tanh(xt @ w1 + b1)
    h = jnp.tanh(h @ w2 + b2)
    h = jnp.tanh(h @ w3 + b3)
    return h @ w4 + b4


if __name__ == "__main__":
    key = jax.random.PRNGKey(0)
    key, kx, kt = jax.random.split(key, 3)

    N = 200  # small batch of collocation points (exercises padding/tiling path)
    x = jax.random.uniform(kx, (N, 1), jnp.float32)   # spatial coordinate
    t = jax.random.uniform(kt, (N, 1), jnp.float32)   # time coordinate

    params = init_params(key)

    out = angiogenesis_pinn_forward(x, t, params)
    out = jax.block_until_ready(out)

    ref = reference_forward(x, t, params)
    assert out.shape == (N, OUT_FEATURES)
    # bf16 matmul operands / bf16 tanh (f32 accumulation) -> relaxed tolerance.
    assert jnp.allclose(out, ref, atol=5e-2, rtol=5e-2), (
        "mismatch vs reference: max abs err = "
        f"{float(jnp.max(jnp.abs(out - ref)))}")

    print("KERNEL_OK")
</pallas_src>

<mosaic_0001>
module attributes {stable_mosaic.version = 11 : i64} {
  func.func @_mlp_kernel(%arg0: i32, %arg1: memref<208x2xf32, #tpu.memory_space<vmem>>, %arg2: memref<2x128xf32, #tpu.memory_space<vmem>>, %arg3: memref<1x128xf32, #tpu.memory_space<vmem>>, %arg4: memref<128x128xbf16, #tpu.memory_space<vmem>>, %arg5: memref<1x128xf32, #tpu.memory_space<vmem>>, %arg6: memref<128x128xbf16, #tpu.memory_space<vmem>>, %arg7: memref<1x128xf32, #tpu.memory_space<vmem>>, %arg8: memref<128x128xbf16, #tpu.memory_space<vmem>>, %arg9: memref<1x128xf32, #tpu.memory_space<vmem>>, %arg10: memref<208x128xf32, #tpu.memory_space<vmem>>) attributes {dimension_semantics = [#tpu.dimension_semantics<parallel>], iteration_bounds = array<i64: 1>, scalar_prefetch = 0 : i64, scratch_operands = 0 : i64, tpu.core_type = #tpu.core_type<tc>, window_params = [{transform_indices = @transform_0, window_bounds = array<i64: 208, 2>}, {pipeline_mode = #tpu.pipeline_mode<synchronous>, transform_indices = @transform_1, window_bounds = array<i64: 2, 128>}, {pipeline_mode = #tpu.pipeline_mode<synchronous>, transform_indices = @transform_2, window_bounds = array<i64: 1, 128>}, {pipeline_mode = #tpu.pipeline_mode<synchronous>, transform_indices = @transform_3, window_bounds = array<i64: 128, 128>}, {pipeline_mode = #tpu.pipeline_mode<synchronous>, transform_indices = @transform_4, window_bounds = array<i64: 1, 128>}, {pipeline_mode = #tpu.pipeline_mode<synchronous>, transform_indices = @transform_5, window_bounds = array<i64: 128, 128>}, {pipeline_mode = #tpu.pipeline_mode<synchronous>, transform_indices = @transform_6, window_bounds = array<i64: 1, 128>}, {pipeline_mode = #tpu.pipeline_mode<synchronous>, transform_indices = @transform_7, window_bounds = array<i64: 128, 128>}, {pipeline_mode = #tpu.pipeline_mode<synchronous>, transform_indices = @transform_8, window_bounds = array<i64: 1, 128>}, {transform_indices = @transform_9, window_bounds = array<i64: 208, 128>}]} {
    %c0 = arith.constant 0 : index
    %c0_0 = arith.constant 0 : index
    %0 = vector.load %arg1[%c0, %c0_0] : memref<208x2xf32, #tpu.memory_space<vmem>>, vector<208x2xf32>
    %c0_1 = arith.constant 0 : index
    %c0_2 = arith.constant 0 : index
    %1 = vector.load %arg2[%c0_1, %c0_2] : memref<2x128xf32, #tpu.memory_space<vmem>>, vector<2x128xf32>
    %cst = arith.constant dense<0.000000e+00> : vector<208x128xf32>
    %2 = tpu.matmul %0, %1, %cst {dimension_numbers = #tpu.dot_dimension_numbers<[1], [0], [0], [1], [0, 0, 1, 1], [], []>} : vector<208x2xf32>, vector<2x128xf32>, vector<208x128xf32> -> vector<208x128xf32>
    %c0_3 = arith.constant 0 : index
    %c0_4 = arith.constant 0 : index
    %3 = vector.load %arg3[%c0_3, %c0_4] : memref<1x128xf32, #tpu.memory_space<vmem>>, vector<1x128xf32>
    %4 = vector.broadcast %3 : vector<1x128xf32> to vector<208x128xf32>
    %5 = arith.addf %2, %4 : vector<208x128xf32>
    %6 = math.tanh %5 : vector<208x128xf32>
    %7 = arith.truncf %6 : vector<208x128xf32> to vector<208x128xbf16>
    %c0_5 = arith.constant 0 : index
    %c0_6 = arith.constant 0 : index
    %8 = vector.load %arg4[%c0_5, %c0_6] : memref<128x128xbf16, #tpu.memory_space<vmem>>, vector<128x128xbf16>
    %cst_7 = arith.constant dense<0.000000e+00> : vector<208x128xf32>
    %9 = tpu.matmul %7, %8, %cst_7 {dimension_numbers = #tpu.dot_dimension_numbers<[1], [0], [0], [1], [0, 0, 1, 1], [], []>} : vector<208x128xbf16>, vector<128x128xbf16>, vector<208x128xf32> -> vector<208x128xf32>
    %c0_8 = arith.constant 0 : index
    %c0_9 = arith.constant 0 : index
    %10 = vector.load %arg5[%c0_8, %c0_9] : memref<1x128xf32, #tpu.memory_space<vmem>>, vector<1x128xf32>
    %11 = vector.broadcast %10 : vector<1x128xf32> to vector<208x128xf32>
    %12 = arith.addf %9, %11 : vector<208x128xf32>
    %13 = math.tanh %12 : vector<208x128xf32>
    %14 = arith.truncf %13 : vector<208x128xf32> to vector<208x128xbf16>
    %c0_10 = arith.constant 0 : index
    %c0_11 = arith.constant 0 : index
    %15 = vector.load %arg6[%c0_10, %c0_11] : memref<128x128xbf16, #tpu.memory_space<vmem>>, vector<128x128xbf16>
    %cst_12 = arith.constant dense<0.000000e+00> : vector<208x128xf32>
    %16 = tpu.matmul %14, %15, %cst_12 {dimension_numbers = #tpu.dot_dimension_numbers<[1], [0], [0], [1], [0, 0, 1, 1], [], []>} : vector<208x128xbf16>, vector<128x128xbf16>, vector<208x128xf32> -> vector<208x128xf32>
    %c0_13 = arith.constant 0 : index
    %c0_14 = arith.constant 0 : index
    %17 = vector.load %arg7[%c0_13, %c0_14] : memref<1x128xf32, #tpu.memory_space<vmem>>, vector<1x128xf32>
    %18 = vector.broadcast %17 : vector<1x128xf32> to vector<208x128xf32>
    %19 = arith.addf %16, %18 : vector<208x128xf32>
    %20 = math.tanh %19 : vector<208x128xf32>
    %21 = arith.truncf %20 : vector<208x128xf32> to vector<208x128xbf16>
    %c0_15 = arith.constant 0 : index
    %c0_16 = arith.constant 0 : index
    %22 = vector.load %arg8[%c0_15, %c0_16] : memref<128x128xbf16, #tpu.memory_space<vmem>>, vector<128x128xbf16>
    %cst_17 = arith.constant dense<0.000000e+00> : vector<208x128xf32>
    %23 = tpu.matmul %21, %22, %cst_17 {dimension_numbers = #tpu.dot_dimension_numbers<[1], [0], [0], [1], [0, 0, 1, 1], [], []>} : vector<208x128xbf16>, vector<128x128xbf16>, vector<208x128xf32> -> vector<208x128xf32>
    %c0_18 = arith.constant 0 : index
    %c0_19 = arith.constant 0 : index
    %24 = vector.load %arg9[%c0_18, %c0_19] : memref<1x128xf32, #tpu.memory_space<vmem>>, vector<1x128xf32>
    %25 = vector.broadcast %24 : vector<1x128xf32> to vector<208x128xf32>
    %26 = arith.addf %23, %25 : vector<208x128xf32>
    %c0_20 = arith.constant 0 : index
    %c0_21 = arith.constant 0 : index
    %27 = vector.load %arg10[%c0_20, %c0_21] : memref<208x128xf32, #tpu.memory_space<vmem>>, vector<208x128xf32>
    tpu.vector_store %arg10[%c0_20, %c0_21], %26 {strides = array<i32>} : memref<208x128xf32, #tpu.memory_space<vmem>>, vector<208x128xf32>,
    return
  }
  func.func @transform_0(%arg0: i32) -> (i32, i32) {
    %c0_i32 = arith.constant 0 : i32
    %c0_i32_0 = arith.constant 0 : i32
    return %arg0, %c0_i32 : i32, i32
  }
  func.func @transform_1(%arg0: i32) -> (i32, i32) {
    %c0_i32 = arith.constant 0 : i32
    %c0_i32_0 = arith.constant 0 : i32
    %c0_i32_1 = arith.constant 0 : i32
    return %c0_i32, %c0_i32_0 : i32, i32
  }
  func.func @transform_2(%arg0: i32) -> (i32, i32) {
    %c0_i32 = arith.constant 0 : i32
    %c0_i32_0 = arith.constant 0 : i32
    %c0_i32_1 = arith.constant 0 : i32
    return %c0_i32, %c0_i32_0 : i32, i32
  }
  func.func @transform_3(%arg0: i32) -> (i32, i32) {
    %c0_i32 = arith.constant 0 : i32
    %c0_i32_0 = arith.constant 0 : i32
    %c0_i32_1 = arith.constant 0 : i32
    return %c0_i32, %c0_i32_0 : i32, i32
  }
  func.func @transform_4(%arg0: i32) -> (i32, i32) {
    %c0_i32 = arith.constant 0 : i32
    %c0_i32_0 = arith.constant 0 : i32
    %c0_i32_1 = arith.constant 0 : i32
    return %c0_i32, %c0_i32_0 : i32, i32
  }
  func.func @transform_5(%arg0: i32) -> (i32, i32) {
    %c0_i32 = arith.constant 0 : i32
    %c0_i32_0 = arith.constant 0 : i32
    %c0_i32_1 = arith.constant 0 : i32
    return %c0_i32, %c0_i32_0 : i32, i32
  }
  func.func @transform_6(%arg0: i32) -> (i32, i32) {
    %c0_i32 = arith.constant 0 : i32
    %c0_i32_0 = arith.constant 0 : i32
    %c0_i32_1 = arith.constant 0 : i32
    return %c0_i32, %c0_i32_0 : i32, i32
  }
  func.func @transform_7(%arg0: i32) -> (i32, i32) {
    %c0_i32 = arith.constant 0 : i32
    %c0_i32_0 = arith.constant 0 : i32
    %c0_i32_1 = arith.constant 0 : i32
    return %c0_i32, %c0_i32_0 : i32, i32
  }
  func.func @transform_8(%arg0: i32) -> (i32, i32) {
    %c0_i32 = arith.constant 0 : i32
    %c0_i32_0 = arith.constant 0 : i32
    %c0_i32_1 = arith.constant 0 : i32
    return %c0_i32, %c0_i32_0 : i32, i32
  }
  func.func @transform_9(%arg0: i32) -> (i32, i32) {
    %c0_i32 = arith.constant 0 : i32
    %c0_i32_0 = arith.constant 0 : i32
    return %arg0, %c0_i32 : i32, i32
  }
}

</mosaic_0001>

<llo_original>
// kernel: tpu_custom_call.1
$region0: #{tpu_custom_call.1}
  #allocation0 [shape = 'u32[]', space=smem, size = 0x4, offset = 0x4, fixed_abs, tag = 'smem constant byte address 0x4 - core index']
  #allocation1 [shape = 'u32[144,128]{1,0:T(1,128)}', space=vmem, size = 0x12000, scoped, tag = 'internal scratch']
  %s0 = inlined_call_operand.vmem [shape: f32[208,2], index: 0, kind: input, shape index: {}]
  %s1 = inlined_call_operand.vmem [shape: f32[2,128], index: 1, kind: input, shape index: {}]
  %s2 = inlined_call_operand.vmem [shape: f32[1,128], index: 2, kind: input, shape index: {}]
  %s3 = inlined_call_operand.vmem [shape: bf16[128,128], index: 3, kind: input, shape index: {}]
  %s4 = inlined_call_operand.vmem [shape: f32[1,128], index: 4, kind: input, shape index: {}]
  %s5 = inlined_call_operand.vmem [shape: bf16[128,128], index: 5, kind: input, shape index: {}]
  %s6 = inlined_call_operand.vmem [shape: f32[1,128], index: 6, kind: input, shape index: {}]
  %s7 = inlined_call_operand.vmem [shape: bf16[128,128], index: 7, kind: input, shape index: {}]
  %s8 = inlined_call_operand.vmem [shape: f32[1,128], index: 8, kind: input, shape index: {}]
  %s9 = inlined_call_operand.hbm [shape: f32[208,128], index: 9, kind: output, shape index: {}]
  %s10 = sld [smem:[#allocation0]]
  $region46: #{tpu_custom_call.1} parent=0
    _
  %s12 = ssub.s32 1, %s10
  %s13 = scalar_select 0, %s12, %s10
  $region1: #{tpu_custom_call.1} parent=0
    #allocation2 [shape = 'u8[106496]{0}', space=vmem, size = 0x1a000, scoped, tag = 'output window, operand 0, single buffered']
    #allocation3 [shape = 's32[1]{0}', space=sflag, size = 0x4, scoped, tag = 'scoped memory for tpu_custom_call.1']
    %14 = vsyncpa [#allocation3], 0
    // Predicated region
    $region2: #{tpu_custom_call.1} parent=1 // pred_check
      _
    $region3: #{tpu_custom_call.1} parent=1 // pred_check_branch
      %16 = sbr.rel (0) target = $region5
    $region4: #{tpu_custom_call.1} parent=1 // pred_region
      _
    $region5: #{tpu_custom_call.1} parent=1 // pred_fallthru
      _
    // Predicated region
    $region6: #{tpu_custom_call.1} parent=1 // pred_check
      _
    $region7: #{tpu_custom_call.1} parent=1 // pred_check_branch
      %18 = sbr.rel (0) target = $region9
    $region8: #{tpu_custom_call.1} parent=1 // pred_region
      _
    $region9: #{tpu_custom_call.1} parent=1 // pred_fallthru
      _
    // Predicated region
    $region10: #{tpu_custom_call.1} parent=1 // pred_check
      _
    $region11: #{tpu_custom_call.1} parent=1 // pred_check_branch
      %20 = sbr.rel (0) target = $region13
    $region12: #{tpu_custom_call.1} parent=1 // pred_region
      _
    $region13: #{tpu_custom_call.1} parent=1 // pred_fallthru
      _
    // Predicated region
    $region14: #{tpu_custom_call.1} parent=1 // pred_check
      _
    $region15: #{tpu_custom_call.1} parent=1 // pred_check_branch
      %22 = sbr.rel (0) target = $region17
    $region16: #{tpu_custom_call.1} parent=1 // pred_region
      _
    $region17: #{tpu_custom_call.1} parent=1 // pred_fallthru
      _
    // Predicated region
    $region18: #{tpu_custom_call.1} parent=1 // pred_check
      _
    $region19: #{tpu_custom_call.1} parent=1 // pred_check_branch
      %24 = sbr.rel (0) target = $region21
    $region20: #{tpu_custom_call.1} parent=1 // pred_region
      _
    $region21: #{tpu_custom_call.1} parent=1 // pred_fallthru
      _
    // Predicated region
    $region22: #{tpu_custom_call.1} parent=1 // pred_check
      _
    $region23: #{tpu_custom_call.1} parent=1 // pred_check_branch
      %26 = sbr.rel (0) target = $region25
    $region24: #{tpu_custom_call.1} parent=1 // pred_region
      _
    $region25: #{tpu_custom_call.1} parent=1 // pred_fallthru
      _
    // Predicated region
    $region26: #{tpu_custom_call.1} parent=1 // pred_check
      _
    $region27: #{tpu_custom_call.1} parent=1 // pred_check_branch
      %28 = sbr.rel (0) target = $region29
    $region28: #{tpu_custom_call.1} parent=1 // pred_region
      _
    $region29: #{tpu_custom_call.1} parent=1 // pred_fallthru
      _
    // Predicated region
    $region30: #{tpu_custom_call.1} parent=1 // pred_check
      _
    $region31: #{tpu_custom_call.1} parent=1 // pred_check_branch
      %30 = sbr.rel (0) target = $region33
    $region32: #{tpu_custom_call.1} parent=1 // pred_region
      _
    $region33: #{tpu_custom_call.1} parent=1 // pred_fallthru
      _
    // Predicated region
    $region34: #{tpu_custom_call.1} parent=1 // pred_check
      _
    $region35: #{tpu_custom_call.1} parent=1 // pred_check_branch
      %32 = sbr.rel (0) target = $region37
    $region36: #{tpu_custom_call.1} parent=1 // pred_region
      _
    $region37: #{tpu_custom_call.1} parent=1 // pred_fallthru
      _
    %v34 = vld [vmem:[%s0] sm:$0xff]
    %v35 = vld [vmem:[%s0 + $0x8] sm:$0xff]
    %v36 = vld [vmem:[%s0 + $0x10] sm:$0xff]
    %v37 = vld [vmem:[%s0 + $0x18] sm:$0xff]
    %v38 = vld [vmem:[%s0 + $0x20] sm:$0xff]
    %v39 = vld [vmem:[%s0 + $0x28] sm:$0xff]
    %v40 = vld [vmem:[%s0 + $0x30] sm:$0xff]
    %v41 = vld [vmem:[%s0 + $0x38] sm:$0xff]
    %v42 = vld [vmem:[%s0 + $0x40] sm:$0xff]
    %v43 = vld [vmem:[%s0 + $0x48] sm:$0xff]
    %v44 = vld [vmem:[%s0 + $0x50] sm:$0xff]
    %v45 = vld [vmem:[%s0 + $0x58] sm:$0xff]
    %v46 = vld [vmem:[%s0 + $0x60] sm:$0xff]
    %v47 = vld [vmem:[%s0 + $0x68] sm:$0xff]
    %v48 = vld [vmem:[%s0 + $0x70] sm:$0xff]
    %v49 = vld [vmem:[%s0 + $0x78] sm:$0xff]
    %v50 = vld [vmem:[%s0 + $0x80] sm:$0xff]
    %v51 = vld [vmem:[%s0 + $0x88] sm:$0xff]
    %v52 = vld [vmem:[%s0 + $0x90] sm:$0xff]
    %v53 = vld [vmem:[%s0 + $0x98] sm:$0xff]
    %v54 = vld [vmem:[%s0 + $0xa0] sm:$0xff]
    %v55 = vld [vmem:[%s0 + $0xa8] sm:$0xff]
    %v56 = vld [vmem:[%s0 + $0xb0] sm:$0xff]
    %v57 = vld [vmem:[%s0 + $0xb8] sm:$0xff]
    %v58 = vld [vmem:[%s0 + $0xc0] sm:$0xff]
    %v59 = vld [vmem:[%s0 + $0xc8] sm:$0xff]
    %v60 = vld [vmem:[%s1] sm:$0x3]
    %v61 = vld [vmem:[%s2] sm:$0x1]
    %v63 = vlaneseq
    %v64 = vshrl.u32 %v63, 7
    %v65 = vsub.s32 0, %v64
    %v66 = vrot.slane %v61, %v65
    %vm68 = vcmask 15360
    %v70 = vsel %vm68, %v34, 0
    %v73 = vsel %vm68, %v35, 0
    %v76 = vsel %vm68, %v36, 0
    %v79 = vsel %vm68, %v37, 0
    %v82 = vsel %vm68, %v38, 0
    %v85 = vsel %vm68, %v39, 0
    %v88 = vsel %vm68, %v40, 0
    %v91 = vsel %vm68, %v41, 0
    %v94 = vsel %vm68, %v42, 0
    %v97 = vsel %vm68, %v43, 0
    %v100 = vsel %vm68, %v44, 0
    %v103 = vsel %vm68, %v45, 0
    %v106 = vsel %vm68, %v46, 0
    %v109 = vsel %vm68, %v47, 0
    %v112 = vsel %vm68, %v48, 0
    %v115 = vsel %vm68, %v49, 0
    %v118 = vsel %vm68, %v50, 0
    %v121 = vsel %vm68, %v51, 0
    %v124 = vsel %vm68, %v52, 0
    %v127 = vsel %vm68, %v53, 0
    %v130 = vsel %vm68, %v54, 0
    %v133 = vsel %vm68, %v55, 0
    %v136 = vsel %vm68, %v56, 0
    %v139 = vsel %vm68, %v57, 0
    %v142 = vsel %vm68, %v58, 0
    %v145 = vsel %vm68, %v59, 0
    %vm147 = vcmask 1041408
    %v149 = vsel %vm147, %v60, 0
    %151 = vmatprep.subr.mxu0 0.0
    %152 = vmatpush1.msra.mxu0 0.0
    %153 = vmatprep.subr.mxu0 0.0
    %154 = vmatpush1.msra.mxu0 0.0
    %155 = vmatprep.subr.mxu0 0.0
    %156 = vmatpush1.msra.mxu0 0.0
    %157 = vmatprep.subr.mxu0 0.0
    %158 = vmatpush1.msra.mxu0 0.0
    %159 = vmatprep.subr.mxu0 0.0
    %160 = vmatpush1.msra.mxu0 0.0
    %161 = vmatprep.subr.mxu0 0.0
    %162 = vmatpush1.msra.mxu0 0.0
    %163 = vmatprep.subr.mxu0 0.0
    %164 = vmatpush1.msra.mxu0 0.0
    %165 = vmatprep.subr.mxu0 0.0
    %166 = vmatpush1.msra.mxu0 0.0
    %167 = vmatprep.subr.mxu0 0.0
    %168 = vmatpush1.msra.mxu0 0.0
    %169 = vmatprep.subr.mxu0 0.0
    %170 = vmatpush1.msra.mxu0 0.0
    %171 = vmatprep.subr.mxu0 0.0
    %172 = vmatpush1.msra.mxu0 0.0
    %173 = vmatprep.subr.mxu0 0.0
    %174 = vmatpush1.msra.mxu0 0.0
    %175 = vmatprep.subr.mxu0 0.0
    %176 = vmatpush1.msra.mxu0 0.0
    %177 = vmatprep.subr.mxu0 0.0
    %178 = vmatpush1.msra.mxu0 0.0
    %179 = vmatprep.subr.mxu0 0.0
    %180 = vmatpush1.msra.mxu0 0.0
    %181 = vmatprep.subr.mxu0 0.0
    %182 = vmatpush1.msra.mxu0 %v149
    %183 = vmatprep.subr.mxu0 0.0
    %184 = vmatpush2.msra.mxu0 0.0
    %185 = vmatprep.subr.mxu0 0.0
    %186 = vmatpush2.msra.mxu0 0.0
    %187 = vmatprep.subr.mxu0 0.0
    %188 = vmatpush2.msra.mxu0 0.0
    %189 = vmatprep.subr.mxu0 0.0
    %190 = vmatpush2.msra.mxu0 0.0
    %191 = vmatprep.subr.mxu0 0.0
    %192 = vmatpush2.msra.mxu0 0.0
    %193 = vmatprep.subr.mxu0 0.0
    %194 = vmatpush2.msra.mxu0 0.0
    %195 = vmatprep.subr.mxu0 0.0
    %196 = vmatpush2.msra.mxu0 0.0
    %197 = vmatprep.subr.mxu0 0.0
    %198 = vmatpush2.msra.mxu0 0.0
    %199 = vmatprep.subr.mxu0 0.0
    %200 = vmatpush2.msra.mxu0 0.0
    %201 = vmatprep.subr.mxu0 0.0
    %202 = vmatpush2.msra.mxu0 0.0
    %203 = vmatprep.subr.mxu0 0.0
    %204 = vmatpush2.msra.mxu0 0.0
    %205 = vmatprep.subr.mxu0 0.0
    %206 = vmatpush2.msra.mxu0 0.0
    %207 = vmatprep.subr.mxu0 0.0
    %208 = vmatpush2.msra.mxu0 0.0
    %209 = vmatprep.subr.mxu0 0.0
    %210 = vmatpush2.msra.mxu0 0.0
    %211 = vmatprep.subr.mxu0 0.0
    %212 = vmatpush2.msra.mxu0 0.0
    %213 = vmatprep.subr.mxu0 0.0
    %214 = vmatpush2.msra.mxu0 0.0
    %215 = vmatprep.mubr.f32.mxu0 0.0
    %216 = vmatmul.mubr.f32.gmra.mxu0 %v70
    %v217 = vpop.f32.mrf.mxu0
    %v218 = vadd.f32 %v66, %v217
    %v219 = vpop.f32.mrf.mxu0
    %220 = vmatprep.mubr.f32.mxu0 0.0
    %221 = vmatmul.mubr.f32.gmra.mxu0 %v73
    %v222 = vpop.f32.mrf.mxu0
    %v223 = vadd.f32 %v66, %v222
    %v224 = vpop.f32.mrf.mxu0
    %225 = vmatprep.mubr.f32.mxu0 0.0
    %226 = vmatmul.mubr.f32.gmra.mxu0 %v76
    %v227 = vpop.f32.mrf.mxu0
    %v228 = vadd.f32 %v66, %v227
    %v229 = vpop.f32.mrf.mxu0
    %230 = vmatprep.mubr.f32.mxu0 0.0
    %231 = vmatmul.mubr.f32.gmra.mxu0 %v79
    %v232 = vpop.f32.mrf.mxu0
    %v233 = vadd.f32 %v66, %v232
    %v234 = vpop.f32.mrf.mxu0
    %235 = vmatprep.mubr.f32.mxu0 0.0
    %236 = vmatmul.mubr.f32.gmra.mxu0 %v82
    %v237 = vpop.f32.mrf.mxu0
    %v238 = vadd.f32 %v66, %v237
    %v239 = vpop.f32.mrf.mxu0
    %240 = vmatprep.mubr.f32.mxu0 0.0
    %241 = vmatmul.mubr.f32.gmra.mxu0 %v85
    %v242 = vpop.f32.mrf.mxu0
    %v243 = vadd.f32 %v66, %v242
    %v244 = vpop.f32.mrf.mxu0
    %245 = vmatprep.mubr.f32.mxu0 0.0
    %246 = vmatmul.mubr.f32.gmra.mxu0 %v88
    %v247 = vpop.f32.mrf.mxu0
    %v248 = vadd.f32 %v66, %v247
    %v249 = vpop.f32.mrf.mxu0
    %250 = vmatprep.mubr.f32.mxu0 0.0
    %251 = vmatmul.mubr.f32.gmra.mxu0 %v91
    %v252 = vpop.f32.mrf.mxu0
    %v253 = vadd.f32 %v66, %v252
    %v254 = vpop.f32.mrf.mxu0
    %255 = vmatprep.mubr.f32.mxu0 0.0
    %256 = vmatmul.mubr.f32.gmra.mxu0 %v94
    %v257 = vpop.f32.mrf.mxu0
    %v258 = vadd.f32 %v66, %v257
    %v259 = vpop.f32.mrf.mxu0
    %260 = vmatprep.mubr.f32.mxu0 0.0
    %261 = vmatmul.mubr.f32.gmra.mxu0 %v97
    %v262 = vpop.f32.mrf.mxu0
    %v263 = vadd.f32 %v66, %v262
    %v264 = vpop.f32.mrf.mxu0
    %265 = vmatprep.mubr.f32.mxu0 0.0
    %266 = vmatmul.mubr.f32.gmra.mxu0 %v100
    %v267 = vpop.f32.mrf.mxu0
    %v268 = vadd.f32 %v66, %v267
    %v269 = vpop.f32.mrf.mxu0
    %270 = vmatprep.mubr.f32.mxu0 0.0
    %271 = vmatmul.mubr.f32.gmra.mxu0 %v103
    %v272 = vpop.f32.mrf.mxu0
    %v273 = vadd.f32 %v66, %v272
    %v274 = vpop.f32.mrf.mxu0
    %275 = vmatprep.mubr.f32.mxu0 0.0
    %276 = vmatmul.mubr.f32.gmra.mxu0 %v106
    %v277 = vpop.f32.mrf.mxu0
    %v278 = vadd.f32 %v66, %v277
    %v279 = vpop.f32.mrf.mxu0
    %280 = vmatprep.mubr.f32.mxu0 0.0
    %281 = vmatmul.mubr.f32.gmra.mxu0 %v109
    %v282 = vpop.f32.mrf.mxu0
    %v283 = vadd.f32 %v66, %v282
    %v284 = vpop.f32.mrf.mxu0
    %285 = vmatprep.mubr.f32.mxu0 0.0
    %286 = vmatmul.mubr.f32.gmra.mxu0 %v112
    %v287 = vpop.f32.mrf.mxu0
    %v288 = vadd.f32 %v66, %v287
    %v289 = vpop.f32.mrf.mxu0
    %290 = vmatprep.mubr.f32.mxu0 0.0
    %291 = vmatmul.mubr.f32.gmra.mxu0 %v115
    %v292 = vpop.f32.mrf.mxu0
    %v293 = vadd.f32 %v66, %v292
    %v294 = vpop.f32.mrf.mxu0
    %295 = vmatprep.mubr.f32.mxu0 0.0
    %296 = vmatmul.mubr.f32.gmra.mxu0 %v118
    %v297 = vpop.f32.mrf.mxu0
    %v298 = vadd.f32 %v66, %v297
    %v299 = vpop.f32.mrf.mxu0
    %300 = vmatprep.mubr.f32.mxu0 0.0
    %301 = vmatmul.mubr.f32.gmra.mxu0 %v121
    %v302 = vpop.f32.mrf.mxu0
    %v303 = vadd.f32 %v66, %v302
    %v304 = vpop.f32.mrf.mxu0
    %305 = vmatprep.mubr.f32.mxu0 0.0
    %306 = vmatmul.mubr.f32.gmra.mxu0 %v124
    %v307 = vpop.f32.mrf.mxu0
    %v308 = vadd.f32 %v66, %v307
    %v309 = vpop.f32.mrf.mxu0
    %310 = vmatprep.mubr.f32.mxu0 0.0
    %311 = vmatmul.mubr.f32.gmra.mxu0 %v127
    %v312 = vpop.f32.mrf.mxu0
    %v313 = vadd.f32 %v66, %v312
    %v314 = vpop.f32.mrf.mxu0
    %315 = vmatprep.mubr.f32.mxu0 0.0
    %316 = vmatmul.mubr.f32.gmra.mxu0 %v130
    %v317 = vpop.f32.mrf.mxu0
    %v318 = vadd.f32 %v66, %v317
    %v319 = vpop.f32.mrf.mxu0
    %320 = vmatprep.mubr.f32.mxu0 0.0
    %321 = vmatmul.mubr.f32.gmra.mxu0 %v133
    %v322 = vpop.f32.mrf.mxu0
    %v323 = vadd.f32 %v66, %v322
    %v324 = vpop.f32.mrf.mxu0
    %325 = vmatprep.mubr.f32.mxu0 0.0
    %326 = vmatmul.mubr.f32.gmra.mxu0 %v136
    %v327 = vpop.f32.mrf.mxu0
    %v328 = vadd.f32 %v66, %v327
    %v329 = vpop.f32.mrf.mxu0
    %330 = vmatprep.mubr.f32.mxu0 0.0
    %331 = vmatmul.mubr.f32.gmra.mxu0 %v139
    %v332 = vpop.f32.mrf.mxu0
    %v333 = vadd.f32 %v66, %v332
    %v334 = vpop.f32.mrf.mxu0
    %335 = vmatprep.mubr.f32.mxu0 0.0
    %336 = vmatmul.mubr.f32.gmra.mxu0 %v142
    %v337 = vpop.f32.mrf.mxu0
    %v338 = vadd.f32 %v66, %v337
    %v339 = vpop.f32.mrf.mxu0
    %340 = vmatprep.mubr.f32.mxu0 0.0
    %341 = vmatmul.mubr.f32.gmra.mxu0 %v145
    %v342 = vpop.f32.mrf.mxu0
    %v343 = vadd.f32 %v66, %v342
    %v344 = vpop.f32.mrf.mxu0
    %345 = vdwg.mxu0
    %v346 = vtanh.pop %v218
    %v347 = vtanh.pop %v223
    %v348 = vtanh.pop %v228
    %v349 = vtanh.pop %v233
    %v350 = vtanh.pop %v238
    %v351 = vtanh.pop %v243
    %v352 = vtanh.pop %v248
    %v353 = vtanh.pop %v253
    %v354 = vtanh.pop %v258
    %v355 = vtanh.pop %v263
    %v356 = vtanh.pop %v268
    %v357 = vtanh.pop %v273
    %v358 = vtanh.pop %v278
    %v359 = vtanh.pop %v283
    %v360 = vtanh.pop %v288
    %v361 = vtanh.pop %v293
    %v362 = vtanh.pop %v298
    %v363 = vtanh.pop %v303
    %v364 = vtanh.pop %v308
    %v365 = vtanh.pop %v313
    %v366 = vtanh.pop %v318
    %v367 = vtanh.pop %v323
    %v368 = vtanh.pop %v328
    %v369 = vtanh.pop %v333
    %v370 = vtanh.pop %v338
    %v371 = vtanh.pop %v343
    %v372 = vpack.c.bf16 %v347, %v346
    %v373 = vpack.c.bf16 %v349, %v348
    %v374 = vpack.c.bf16 %v351, %v350
    %v375 = vpack.c.bf16 %v353, %v352
    %v376 = vpack.c.bf16 %v355, %v354
    %v377 = vpack.c.bf16 %v357, %v356
    %v378 = vpack.c.bf16 %v359, %v358
    %v379 = vpack.c.bf16 %v361, %v360
    %v380 = vpack.c.bf16 %v363, %v362
    %v381 = vpack.c.bf16 %v365, %v364
    %v382 = vpack.c.bf16 %v367, %v366
    %v383 = vpack.c.bf16 %v369, %v368
    %v384 = vpack.c.bf16 %v371, %v370
    %v385 = vld [vmem:[%s3] sm:$0xf]
    %v386 = vld [vmem:[%s3 + $0x4] sm:$0xf]
    %v387 = vld [vmem:[%s3 + $0x8] sm:$0xf]
    %v388 = vld [vmem:[%s3 + $0xc] sm:$0xf]
    %v389 = vld [vmem:[%s3 + $0x10] sm:$0xf]
    %v390 = vld [vmem:[%s3 + $0x14] sm:$0xf]
    %v391 = vld [vmem:[%s3 + $0x18] sm:$0xf]
    %v392 = vld [vmem:[%s3 + $0x1c] sm:$0xf]
    %v393 = vld [vmem:[%s3 + $0x20] sm:$0xf]
    %v394 = vld [vmem:[%s3 + $0x24] sm:$0xf]
    %v395 = vld [vmem:[%s3 + $0x28] sm:$0xf]
    %v396 = vld [vmem:[%s3 + $0x2c] sm:$0xf]
    %v397 = vld [vmem:[%s3 + $0x30] sm:$0xf]
    %v398 = vld [vmem:[%s3 + $0x34] sm:$0xf]
    %v399 = vld [vmem:[%s3 + $0x38] sm:$0xf]
    %v400 = vld [vmem:[%s3 + $0x3c] sm:$0xf]
    %v401 = vld [vmem:[%s4] sm:$0x1]
    %v403 = vlaneseq
    %v404 = vshrl.u32 %v403, 7
    %v405 = vsub.s32 0, %v404
    %v406 = vrot.slane %v401, %v405
    %v424 = vunpack.c.l.b16 %v385
    %v425 = vunpack.c.l.b16 %v386
    %v426 = vunpack.c.l.b16 %v387
    %v427 = vunpack.c.l.b16 %v388
    %v428 = vunpack.c.l.b16 %v389
    %v429 = vunpack.c.l.b16 %v390
    %v430 = vunpack.c.l.b16 %v391
    %v431 = vunpack.c.l.b16 %v392
    %v432 = vunpack.c.l.b16 %v393
    %v433 = vunpack.c.l.b16 %v394
    %v434 = vunpack.c.l.b16 %v395
    %v435 = vunpack.c.l.b16 %v396
    %v436 = vunpack.c.l.b16 %v397
    %v437 = vunpack.c.l.b16 %v398
    %v438 = vunpack.c.l.b16 %v399
    %v439 = vunpack.c.l.b16 %v400
    %v440 = vpack.c.b16 %v425, %v424
    %v441 = vpack.c.b16 %v427, %v426
    %v442 = vpack.c.b16 %v429, %v428
    %v443 = vpack.c.b16 %v431, %v430
    %v444 = vpack.c.b16 %v433, %v432
    %v445 = vpack.c.b16 %v435, %v434
    %v446 = vpack.c.b16 %v437, %v436
    %v447 = vpack.c.b16 %v439, %v438
    %456 = vmatprep.subr.bf16.mxu0 0
    %457 = vmatpush1.bf16.msra.mxu0 %v447
    %458 = vmatprep.subr.bf16.mxu0 0
    %459 = vmatpush1.bf16.msra.mxu0 %v446
    %460 = vmatprep.subr.bf16.mxu0 0
    %461 = vmatpush1.bf16.msra.mxu0 %v445
    %462 = vmatprep.subr.bf16.mxu0 0
    %463 = vmatpush1.bf16.msra.mxu0 %v444
    %464 = vmatprep.subr.bf16.mxu0 0
    %465 = vmatpush1.bf16.msra.mxu0 %v443
    %466 = vmatprep.subr.bf16.mxu0 0
    %467 = vmatpush1.bf16.msra.mxu0 %v442
    %468 = vmatprep.subr.bf16.mxu0 0
    %469 = vmatpush1.bf16.msra.mxu0 %v441
    %470 = vmatprep.subr.bf16.mxu0 0
    %471 = vmatpush1.bf16.msra.mxu0 %v440
    %472 = vmatprep.subr.bf16.mxu0 0
    %473 = vmatpush2.bf16.msra.mxu0 0
    %474 = vmatprep.subr.bf16.mxu0 0
    %475 = vmatpush2.bf16.msra.mxu0 0
    %476 = vmatprep.subr.bf16.mxu0 0
    %477 = vmatpush2.bf16.msra.mxu0 0
    %478 = vmatprep.subr.bf16.mxu0 0
    %479 = vmatpush2.bf16.msra.mxu0 0
    %480 = vmatprep.subr.bf16.mxu0 0
    %481 = vmatpush2.bf16.msra.mxu0 0
    %482 = vmatprep.subr.bf16.mxu0 0
    %483 = vmatpush2.bf16.msra.mxu0 0
    %484 = vmatprep.subr.bf16.mxu0 0
    %485 = vmatpush2.bf16.msra.mxu0 0
    %486 = vmatprep.subr.bf16.mxu0 0
    %487 = vmatpush2.bf16.msra.mxu0 0
    %488 = vmatprep.mubr.bf16.mxu0 0
    %489 = vmatmul.mubr.bf16.gmra.mxu0 %v372
    %v490 = vpop.f32.mrf.mxu0
    %v491 = vadd.f32 %v406, %v490
    %v492 = vpop.f32.mrf.mxu0
    %v493 = vpop.f32.mrf.mxu0
    %v494 = vadd.f32 %v406, %v493
    %v495 = vpop.f32.mrf.mxu0
    %496 = vmatprep.mubr.bf16.mxu0 0
    %497 = vmatmul.mubr.bf16.gmra.mxu0 %v373
    %v498 = vpop.f32.mrf.mxu0
    %v499 = vadd.f32 %v406, %v498
    %v500 = vpop.f32.mrf.mxu0
    %v501 = vpop.f32.mrf.mxu0
    %v502 = vadd.f32 %v406, %v501
    %v503 = vpop.f32.mrf.mxu0
    %504 = vmatprep.mubr.bf16.mxu0 0
    %505 = vmatmul.mubr.bf16.gmra.mxu0 %v374
    %v506 = vpop.f32.mrf.mxu0
    %v507 = vadd.f32 %v406, %v506
    %v508 = vpop.f32.mrf.mxu0
    %v509 = vpop.f32.mrf.mxu0
    %v510 = vadd.f32 %v406, %v509
    %v511 = vpop.f32.mrf.mxu0
    %512 = vmatprep.mubr.bf16.mxu0 0
    %513 = vmatmul.mubr.bf16.gmra.mxu0 %v375
    %v514 = vpop.f32.mrf.mxu0
    %v515 = vadd.f32 %v406, %v514
    %v516 = vpop.f32.mrf.mxu0
    %v517 = vpop.f32.mrf.mxu0
    %v518 = vadd.f32 %v406, %v517
    %v519 = vpop.f32.mrf.mxu0
    %520 = vmatprep.mubr.bf16.mxu0 0
    %521 = vmatmul.mubr.bf16.gmra.mxu0 %v376
    %v522 = vpop.f32.mrf.mxu0
    %v523 = vadd.f32 %v406, %v522
    %v524 = vpop.f32.mrf.mxu0
    %v525 = vpop.f32.mrf.mxu0
    %v526 = vadd.f32 %v406, %v525
    %v527 = vpop.f32.mrf.mxu0
    %528 = vmatprep.mubr.bf16.mxu0 0
    %529 = vmatmul.mubr.bf16.gmra.mxu0 %v377
    %v530 = vpop.f32.mrf.mxu0
    %v531 = vadd.f32 %v406, %v530
    %v532 = vpop.f32.mrf.mxu0
    %v533 = vpop.f32.mrf.mxu0
    %v534 = vadd.f32 %v406, %v533
    %v535 = vpop.f32.mrf.mxu0
    %536 = vmatprep.mubr.bf16.mxu0 0
    %537 = vmatmul.mubr.bf16.gmra.mxu0 %v378
    %v538 = vpop.f32.mrf.mxu0
    %v539 = vadd.f32 %v406, %v538
    %v540 = vpop.f32.mrf.mxu0
    %v541 = vpop.f32.mrf.mxu0
    %v542 = vadd.f32 %v406, %v541
    %v543 = vpop.f32.mrf.mxu0
    %544 = vmatprep.mubr.bf16.mxu0 0
    %545 = vmatmul.mubr.bf16.gmra.mxu0 %v379
    %v546 = vpop.f32.mrf.mxu0
    %v547 = vadd.f32 %v406, %v546
    %v548 = vpop.f32.mrf.mxu0
    %v549 = vpop.f32.mrf.mxu0
    %v550 = vadd.f32 %v406, %v549
    %v551 = vpop.f32.mrf.mxu0
    %552 = vmatprep.mubr.bf16.mxu0 0
    %553 = vmatmul.mubr.bf16.gmra.mxu0 %v380
    %v554 = vpop.f32.mrf.mxu0
    %v555 = vadd.f32 %v406, %v554
    %v556 = vpop.f32.mrf.mxu0
    %v557 = vpop.f32.mrf.mxu0
    %v558 = vadd.f32 %v406, %v557
    %v559 = vpop.f32.mrf.mxu0
    %560 = vmatprep.mubr.bf16.mxu0 0
    %561 = vmatmul.mubr.bf16.gmra.mxu0 %v381
    %v562 = vpop.f32.mrf.mxu0
    %v563 = vadd.f32 %v406, %v562
    %v564 = vpop.f32.mrf.mxu0
    %v565 = vpop.f32.mrf.mxu0
    %v566 = vadd.f32 %v406, %v565
    %v567 = vpop.f32.mrf.mxu0
    %568 = vmatprep.mubr.bf16.mxu0 0
    %569 = vmatmul.mubr.bf16.gmra.mxu0 %v382
    %v570 = vpop.f32.mrf.mxu0
    %v571 = vadd.f32 %v406, %v570
    %v572 = vpop.f32.mrf.mxu0
    %v573 = vpop.f32.mrf.mxu0
    %v574 = vadd.f32 %v406, %v573
    %v575 = vpop.f32.mrf.mxu0
    %576 = vmatprep.mubr.bf16.mxu0 0
    %577 = vmatmul.mubr.bf16.gmra.mxu0 %v383
    %v578 = vpop.f32.mrf.mxu0
    %v579 = vadd.f32 %v406, %v578
    %v580 = vpop.f32.mrf.mxu0
    %v581 = vpop.f32.mrf.mxu0
    %v582 = vadd.f32 %v406, %v581
    %v583 = vpop.f32.mrf.mxu0
    %584 = vmatprep.mubr.bf16.mxu0 0
    %585 = vmatmul.mubr.bf16.gmra.mxu0 %v384
    %v586 = vpop.f32.mrf.mxu0
    %v587 = vadd.f32 %v406, %v586
    %v588 = vpop.f32.mrf.mxu0
    %v589 = vpop.f32.mrf.mxu0
    %v590 = vadd.f32 %v406, %v589
    %v591 = vpop.f32.mrf.mxu0
    %592 = vdwg.mxu0
    %v593 = vtanh.pop %v491
    %v594 = vtanh.pop %v494
    %v595 = vtanh.pop %v499
    %v596 = vtanh.pop %v502
    %v597 = vtanh.pop %v507
    %v598 = vtanh.pop %v510
    %v599 = vtanh.pop %v515
    %v600 = vtanh.pop %v518
    %v601 = vtanh.pop %v523
    %v602 = vtanh.pop %v526
    %v603 = vtanh.pop %v531
    %v604 = vtanh.pop %v534
    %v605 = vtanh.pop %v539
    %v606 = vtanh.pop %v542
    %v607 = vtanh.pop %v547
    %v608 = vtanh.pop %v550
    %v609 = vtanh.pop %v555
    %v610 = vtanh.pop %v558
    %v611 = vtanh.pop %v563
    %v612 = vtanh.pop %v566
    %v613 = vtanh.pop %v571
    %v614 = vtanh.pop %v574
    %v615 = vtanh.pop %v579
    %v616 = vtanh.pop %v582
    %v617 = vtanh.pop %v587
    %v618 = vtanh.pop %v590
    %v619 = vpack.c.bf16 %v594, %v593
    %v620 = vpack.c.bf16 %v596, %v595
    %v621 = vpack.c.bf16 %v598, %v597
    %v622 = vpack.c.bf16 %v600, %v599
    %v623 = vpack.c.bf16 %v602, %v601
    %v624 = vpack.c.bf16 %v604, %v603
    %v625 = vpack.c.bf16 %v606, %v605
    %v626 = vpack.c.bf16 %v608, %v607
    %v627 = vpack.c.bf16 %v610, %v609
    %v628 = vpack.c.bf16 %v612, %v611
    %v629 = vpack.c.bf16 %v614, %v613
    %v630 = vpack.c.bf16 %v616, %v615
    %v631 = vpack.c.bf16 %v618, %v617
    %v632 = vld [vmem:[%s5] sm:$0xf]
    %v633 = vld [vmem:[%s5 + $0x4] sm:$0xf]
    %v634 = vld [vmem:[%s5 + $0x8] sm:$0xf]
    %v635 = vld [vmem:[%s5 + $0xc] sm:$0xf]
    %v636 = vld [vmem:[%s5 + $0x10] sm:$0xf]
    %v637 = vld [vmem:[%s5 + $0x14] sm:$0xf]
    %v638 = vld [vmem:[%s5 + $0x18] sm:$0xf]
    %v639 = vld [vmem:[%s5 + $0x1c] sm:$0xf]
    %v640 = vld [vmem:[%s5 + $0x20] sm:$0xf]
    %v641 = vld [vmem:[%s5 + $0x24] sm:$0xf]
    %v642 = vld [vmem:[%s5 + $0x28] sm:$0xf]
    %v643 = vld [vmem:[%s5 + $0x2c] sm:$0xf]
    %v644 = vld [vmem:[%s5 + $0x30] sm:$0xf]
    %v645 = vld [vmem:[%s5 + $0x34] sm:$0xf]
    %v646 = vld [vmem:[%s5 + $0x38] sm:$0xf]
    %v647 = vld [vmem:[%s5 + $0x3c] sm:$0xf]
    %v648 = vld [vmem:[%s6] sm:$0x1]
    %v650 = vlaneseq
    %v651 = vshrl.u32 %v650, 7
    %v652 = vsub.s32 0, %v651
    %v653 = vrot.slane %v648, %v652
    %v671 = vunpack.c.l.b16 %v632
    %v672 = vunpack.c.l.b16 %v633
    %v673 = vunpack.c.l.b16 %v634
    %v674 = vunpack.c.l.b16 %v635
    %v675 = vunpack.c.l.b16 %v636
    %v676 = vunpack.c.l.b16 %v637
    %v677 = vunpack.c.l.b16 %v638
    %v678 = vunpack.c.l.b16 %v639
    %v679 = vunpack.c.l.b16 %v640
    %v680 = vunpack.c.l.b16 %v641
    %v681 = vunpack.c.l.b16 %v642
    %v682 = vunpack.c.l.b16 %v643
    %v683 = vunpack.c.l.b16 %v644
    %v684 = vunpack.c.l.b16 %v645
    %v685 = vunpack.c.l.b16 %v646
    %v686 = vunpack.c.l.b16 %v647
    %v687 = vpack.c.b16 %v672, %v671
    %v688 = vpack.c.b16 %v674, %v673
    %v689 = vpack.c.b16 %v676, %v675
    %v690 = vpack.c.b16 %v678, %v677
    %v691 = vpack.c.b16 %v680, %v679
    %v692 = vpack.c.b16 %v682, %v681
    %v693 = vpack.c.b16 %v684, %v683
    %v694 = vpack.c.b16 %v686, %v685
    %703 = vmatprep.subr.bf16.mxu0 0
    %704 = vmatpush1.bf16.msra.mxu0 %v694
    %705 = vmatprep.subr.bf16.mxu0 0
    %706 = vmatpush1.bf16.msra.mxu0 %v693
    %707 = vmatprep.subr.bf16.mxu0 0
    %708 = vmatpush1.bf16.msra.mxu0 %v692
    %709 = vmatprep.subr.bf16.mxu0 0
    %710 = vmatpush1.bf16.msra.mxu0 %v691
    %711 = vmatprep.subr.bf16.mxu0 0
    %712 = vmatpush1.bf16.msra.mxu0 %v690
    %713 = vmatprep.subr.bf16.mxu0 0
    %714 = vmatpush1.bf16.msra.mxu0 %v689
    %715 = vmatprep.subr.bf16.mxu0 0
    %716 = vmatpush1.bf16.msra.mxu0 %v688
    %717 = vmatprep.subr.bf16.mxu0 0
    %718 = vmatpush1.bf16.msra.mxu0 %v687
    %719 = vmatprep.subr.bf16.mxu0 0
    %720 = vmatpush2.bf16.msra.mxu0 0
    %721 = vmatprep.subr.bf16.mxu0 0
    %722 = vmatpush2.bf16.msra.mxu0 0
    %723 = vmatprep.subr.bf16.mxu0 0
    %724 = vmatpush2.bf16.msra.mxu0 0
    %725 = vmatprep.subr.bf16.mxu0 0
    %726 = vmatpush2.bf16.msra.mxu0 0
    %727 = vmatprep.subr.bf16.mxu0 0
    %728 = vmatpush2.bf16.msra.mxu0 0
    %729 = vmatprep.subr.bf16.mxu0 0
    %730 = vmatpush2.bf16.msra.mxu0 0
    %731 = vmatprep.subr.bf16.mxu0 0
    %732 = vmatpush2.bf16.msra.mxu0 0
    %733 = vmatprep.subr.bf16.mxu0 0
    %734 = vmatpush2.bf16.msra.mxu0 0
    %735 = vmatprep.mubr.bf16.mxu0 0
    %736 = vmatmul.mubr.bf16.gmra.mxu0 %v619
    %v737 = vpop.f32.mrf.mxu0
    %v738 = vadd.f32 %v653, %v737
    %v739 = vpop.f32.mrf.mxu0
    %v740 = vpop.f32.mrf.mxu0
    %v741 = vadd.f32 %v653, %v740
    %v742 = vpop.f32.mrf.mxu0
    %743 = vmatprep.mubr.bf16.mxu0 0
    %744 = vmatmul.mubr.bf16.gmra.mxu0 %v620
    %v745 = vpop.f32.mrf.mxu0
    %v746 = vadd.f32 %v653, %v745
    %v747 = vpop.f32.mrf.mxu0
    %v748 = vpop.f32.mrf.mxu0
    %v749 = vadd.f32 %v653, %v748
    %v750 = vpop.f32.mrf.mxu0
    %751 = vmatprep.mubr.bf16.mxu0 0
    %752 = vmatmul.mubr.bf16.gmra.mxu0 %v621
    %v753 = vpop.f32.mrf.mxu0
    %v754 = vadd.f32 %v653, %v753
    %v755 = vpop.f32.mrf.mxu0
    %v756 = vpop.f32.mrf.mxu0
    %v757 = vadd.f32 %v653, %v756
    %v758 = vpop.f32.mrf.mxu0
    %759 = vmatprep.mubr.bf16.mxu0 0
    %760 = vmatmul.mubr.bf16.gmra.mxu0 %v622
    %v761 = vpop.f32.mrf.mxu0
    %v762 = vadd.f32 %v653, %v761
    %v763 = vpop.f32.mrf.mxu0
    %v764 = vpop.f32.mrf.mxu0
    %v765 = vadd.f32 %v653, %v764
    %v766 = vpop.f32.mrf.mxu0
    %767 = vmatprep.mubr.bf16.mxu0 0
    %768 = vmatmul.mubr.bf16.gmra.mxu0 %v623
    %v769 = vpop.f32.mrf.mxu0
    %v770 = vadd.f32 %v653, %v769
    %v771 = vpop.f32.mrf.mxu0
    %v772 = vpop.f32.mrf.mxu0
    %v773 = vadd.f32 %v653, %v772
    %v774 = vpop.f32.mrf.mxu0
    %775 = vmatprep.mubr.bf16.mxu0 0
    %776 = vmatmul.mubr.bf16.gmra.mxu0 %v624
    %v777 = vpop.f32.mrf.mxu0
    %v778 = vadd.f32 %v653, %v777
    %v779 = vpop.f32.mrf.mxu0
    %v780 = vpop.f32.mrf.mxu0
    %v781 = vadd.f32 %v653, %v780
    %v782 = vpop.f32.mrf.mxu0
    %783 = vmatprep.mubr.bf16.mxu0 0
    %784 = vmatmul.mubr.bf16.gmra.mxu0 %v625
    %v785 = vpop.f32.mrf.mxu0
    %v786 = vadd.f32 %v653, %v785
    %v787 = vpop.f32.mrf.mxu0
    %v788 = vpop.f32.mrf.mxu0
    %v789 = vadd.f32 %v653, %v788
    %v790 = vpop.f32.mrf.mxu0
    %791 = vmatprep.mubr.bf16.mxu0 0
    %792 = vmatmul.mubr.bf16.gmra.mxu0 %v626
    %v793 = vpop.f32.mrf.mxu0
    %v794 = vadd.f32 %v653, %v793
    %v795 = vpop.f32.mrf.mxu0
    %v796 = vpop.f32.mrf.mxu0
    %v797 = vadd.f32 %v653, %v796
    %v798 = vpop.f32.mrf.mxu0
    %799 = vmatprep.mubr.bf16.mxu0 0
    %800 = vmatmul.mubr.bf16.gmra.mxu0 %v627
    %v801 = vpop.f32.mrf.mxu0
    %v802 = vadd.f32 %v653, %v801
    %v803 = vpop.f32.mrf.mxu0
    %v804 = vpop.f32.mrf.mxu0
    %v805 = vadd.f32 %v653, %v804
    %v806 = vpop.f32.mrf.mxu0
    %807 = vmatprep.mubr.bf16.mxu0 0
    %808 = vmatmul.mubr.bf16.gmra.mxu0 %v628
    %v809 = vpop.f32.mrf.mxu0
    %v810 = vadd.f32 %v653, %v809
    %v811 = vpop.f32.mrf.mxu0
    %v812 = vpop.f32.mrf.mxu0
    %v813 = vadd.f32 %v653, %v812
    %v814 = vpop.f32.mrf.mxu0
    %815 = vmatprep.mubr.bf16.mxu0 0
    %816 = vmatmul.mubr.bf16.gmra.mxu0 %v629
    %v817 = vpop.f32.mrf.mxu0
    %v818 = vadd.f32 %v653, %v817
    %v819 = vpop.f32.mrf.mxu0
    %v820 = vpop.f32.mrf.mxu0
    %v821 = vadd.f32 %v653, %v820
    %v822 = vpop.f32.mrf.mxu0
    %823 = vmatprep.mubr.bf16.mxu0 0
    %824 = vmatmul.mubr.bf16.gmra.mxu0 %v630
    %v825 = vpop.f32.mrf.mxu0
    %v826 = vadd.f32 %v653, %v825
    %v827 = vpop.f32.mrf.mxu0
    %v828 = vpop.f32.mrf.mxu0
    %v829 = vadd.f32 %v653, %v828
    %v830 = vpop.f32.mrf.mxu0
    %831 = vmatprep.mubr.bf16.mxu0 0
    %832 = vmatmul.mubr.bf16.gmra.mxu0 %v631
    %v833 = vpop.f32.mrf.mxu0
    %v834 = vadd.f32 %v653, %v833
    %v835 = vpop.f32.mrf.mxu0
    %v836 = vpop.f32.mrf.mxu0
    %v837 = vadd.f32 %v653, %v836
    %v838 = vpop.f32.mrf.mxu0
    %839 = vdwg.mxu0
    %v840 = vtanh.pop %v738
    %v841 = vtanh.pop %v741
    %v842 = vtanh.pop %v746
    %v843 = vtanh.pop %v749
    %v844 = vtanh.pop %v754
    %v845 = vtanh.pop %v757
    %v846 = vtanh.pop %v762
    %v847 = vtanh.pop %v765
    %v848 = vtanh.pop %v770
    %v849 = vtanh.pop %v773
    %v850 = vtanh.pop %v778
    %v851 = vtanh.pop %v781
    %v852 = vtanh.pop %v786
    %v853 = vtanh.pop %v789
    %v854 = vtanh.pop %v794
    %v855 = vtanh.pop %v797
    %v856 = vtanh.pop %v802
    %v857 = vtanh.pop %v805
    %v858 = vtanh.pop %v810
    %v859 = vtanh.pop %v813
    %v860 = vtanh.pop %v818
    %v861 = vtanh.pop %v821
    %v862 = vtanh.pop %v826
    %v863 = vtanh.pop %v829
    %v864 = vtanh.pop %v834
    %v865 = vtanh.pop %v837
    %v866 = vpack.c.bf16 %v841, %v840
    %v867 = vpack.c.bf16 %v843, %v842
    %v868 = vpack.c.bf16 %v845, %v844
    %v869 = vpack.c.bf16 %v847, %v846
    %v870 = vpack.c.bf16 %v849, %v848
    %v871 = vpack.c.bf16 %v851, %v850
    %v872 = vpack.c.bf16 %v853, %v852
    %v873 = vpack.c.bf16 %v855, %v854
    %v874 = vpack.c.bf16 %v857, %v856
    %v875 = vpack.c.bf16 %v859, %v858
    %v876 = vpack.c.bf16 %v861, %v860
    %v877 = vpack.c.bf16 %v863, %v862
    %v878 = vpack.c.bf16 %v865, %v864
    %v879 = vld [vmem:[%s7] sm:$0xf]
    %v880 = vld [vmem:[%s7 + $0x4] sm:$0xf]
    %v881 = vld [vmem:[%s7 + $0x8] sm:$0xf]
    %v882 = vld [vmem:[%s7 + $0xc] sm:$0xf]
    %v883 = vld [vmem:[%s7 + $0x10] sm:$0xf]
    %v884 = vld [vmem:[%s7 + $0x14] sm:$0xf]
    %v885 = vld [vmem:[%s7 + $0x18] sm:$0xf]
    %v886 = vld [vmem:[%s7 + $0x1c] sm:$0xf]
    %v887 = vld [vmem:[%s7 + $0x20] sm:$0xf]
    %v888 = vld [vmem:[%s7 + $0x24] sm:$0xf]
    %v889 = vld [vmem:[%s7 + $0x28] sm:$0xf]
    %v890 = vld [vmem:[%s7 + $0x2c] sm:$0xf]
    %v891 = vld [vmem:[%s7 + $0x30] sm:$0xf]
    %v892 = vld [vmem:[%s7 + $0x34] sm:$0xf]
    %v893 = vld [vmem:[%s7 + $0x38] sm:$0xf]
    %v894 = vld [vmem:[%s7 + $0x3c] sm:$0xf]
    %v895 = vld [vmem:[%s8] sm:$0x1]
    %v897 = vlaneseq
    %v898 = vshrl.u32 %v897, 7
    %v899 = vsub.s32 0, %v898
    %v900 = vrot.slane %v895, %v899
    %v918 = vunpack.c.l.b16 %v879
    %v919 = vunpack.c.l.b16 %v880
    %v920 = vunpack.c.l.b16 %v881
    %v921 = vunpack.c.l.b16 %v882
    %v922 = vunpack.c.l.b16 %v883
    %v923 = vunpack.c.l.b16 %v884
    %v924 = vunpack.c.l.b16 %v885
    %v925 = vunpack.c.l.b16 %v886
    %v926 = vunpack.c.l.b16 %v887
    %v927 = vunpack.c.l.b16 %v888
    %v928 = vunpack.c.l.b16 %v889
    %v929 = vunpack.c.l.b16 %v890
    %v930 = vunpack.c.l.b16 %v891
    %v931 = vunpack.c.l.b16 %v892
    %v932 = vunpack.c.l.b16 %v893
    %v933 = vunpack.c.l.b16 %v894
    %v934 = vpack.c.b16 %v919, %v918
    %v935 = vpack.c.b16 %v921, %v920
    %v936 = vpack.c.b16 %v923, %v922
    %v937 = vpack.c.b16 %v925, %v924
    %v938 = vpack.c.b16 %v927, %v926
    %v939 = vpack.c.b16 %v929, %v928
    %v940 = vpack.c.b16 %v931, %v930
    %v941 = vpack.c.b16 %v933, %v932
    %950 = vmatprep.subr.bf16.mxu0 0
    %951 = vmatpush1.bf16.msra.mxu0 %v941
    %952 = vmatprep.subr.bf16.mxu0 0
    %953 = vmatpush1.bf16.msra.mxu0 %v940
    %954 = vmatprep.subr.bf16.mxu0 0
    %955 = vmatpush1.bf16.msra.mxu0 %v939
    %956 = vmatprep.subr.bf16.mxu0 0
    %957 = vmatpush1.bf16.msra.mxu0 %v938
    %958 = vmatprep.subr.bf16.mxu0 0
    %959 = vmatpush1.bf16.msra.mxu0 %v937
    %960 = vmatprep.subr.bf16.mxu0 0
    %961 = vmatpush1.bf16.msra.mxu0 %v936
    %962 = vmatprep.subr.bf16.mxu0 0
    %963 = vmatpush1.bf16.msra.mxu0 %v935
    %964 = vmatprep.subr.bf16.mxu0 0
    %965 = vmatpush1.bf16.msra.mxu0 %v934
    %966 = vmatprep.subr.bf16.mxu0 0
    %967 = vmatpush2.bf16.msra.mxu0 0
    %968 = vmatprep.subr.bf16.mxu0 0
    %969 = vmatpush2.bf16.msra.mxu0 0
    %970 = vmatprep.subr.bf16.mxu0 0
    %971 = vmatpush2.bf16.msra.mxu0 0
    %972 = vmatprep.subr.bf16.mxu0 0
    %973 = vmatpush2.bf16.msra.mxu0 0
    %974 = vmatprep.subr.bf16.mxu0 0
    %975 = vmatpush2.bf16.msra.mxu0 0
    %976 = vmatprep.subr.bf16.mxu0 0
    %977 = vmatpush2.bf16.msra.mxu0 0
    %978 = vmatprep.subr.bf16.mxu0 0
    %979 = vmatpush2.bf16.msra.mxu0 0
    %980 = vmatprep.subr.bf16.mxu0 0
    %981 = vmatpush2.bf16.msra.mxu0 0
    %982 = vmatprep.mubr.bf16.mxu0 0
    %983 = vmatmul.mubr.bf16.gmra.mxu0 %v866
    %v984 = vpop.f32.mrf.mxu0
    %v985 = vadd.f32 %v900, %v984
    %v986 = vpop.f32.mrf.mxu0
    %v987 = vpop.f32.mrf.mxu0
    %v988 = vadd.f32 %v900, %v987
    %v989 = vpop.f32.mrf.mxu0
    %990 = vmatprep.mubr.bf16.mxu0 0
    %991 = vmatmul.mubr.bf16.gmra.mxu0 %v867
    %v992 = vpop.f32.mrf.mxu0
    %v993 = vadd.f32 %v900, %v992
    %v994 = vpop.f32.mrf.mxu0
    %v995 = vpop.f32.mrf.mxu0
    %v996 = vadd.f32 %v900, %v995
    %v997 = vpop.f32.mrf.mxu0
    %998 = vmatprep.mubr.bf16.mxu0 0
    %999 = vmatmul.mubr.bf16.gmra.mxu0 %v868
    %v1000 = vpop.f32.mrf.mxu0
    %v1001 = vadd.f32 %v900, %v1000
    %v1002 = vpop.f32.mrf.mxu0
    %v1003 = vpop.f32.mrf.mxu0
    %v1004 = vadd.f32 %v900, %v1003
    %v1005 = vpop.f32.mrf.mxu0
    %1006 = vmatprep.mubr.bf16.mxu0 0
    %1007 = vmatmul.mubr.bf16.gmra.mxu0 %v869
    %v1008 = vpop.f32.mrf.mxu0
    %v1009 = vadd.f32 %v900, %v1008
    %v1010 = vpop.f32.mrf.mxu0
    %v1011 = vpop.f32.mrf.mxu0
    %v1012 = vadd.f32 %v900, %v1011
    %v1013 = vpop.f32.mrf.mxu0
    %1014 = vmatprep.mubr.bf16.mxu0 0
    %1015 = vmatmul.mubr.bf16.gmra.mxu0 %v870
    %v1016 = vpop.f32.mrf.mxu0
    %v1017 = vadd.f32 %v900, %v1016
    %v1018 = vpop.f32.mrf.mxu0
    %v1019 = vpop.f32.mrf.mxu0
    %v1020 = vadd.f32 %v900, %v1019
    %v1021 = vpop.f32.mrf.mxu0
    %1022 = vmatprep.mubr.bf16.mxu0 0
    %1023 = vmatmul.mubr.bf16.gmra.mxu0 %v871
    %v1024 = vpop.f32.mrf.mxu0
    %v1025 = vadd.f32 %v900, %v1024
    %v1026 = vpop.f32.mrf.mxu0
    %v1027 = vpop.f32.mrf.mxu0
    %v1028 = vadd.f32 %v900, %v1027
    %v1029 = vpop.f32.mrf.mxu0
    %1030 = vmatprep.mubr.bf16.mxu0 0
    %1031 = vmatmul.mubr.bf16.gmra.mxu0 %v872
    %v1032 = vpop.f32.mrf.mxu0
    %v1033 = vadd.f32 %v900, %v1032
    %v1034 = vpop.f32.mrf.mxu0
    %v1035 = vpop.f32.mrf.mxu0
    %v1036 = vadd.f32 %v900, %v1035
    %v1037 = vpop.f32.mrf.mxu0
    %1038 = vmatprep.mubr.bf16.mxu0 0
    %1039 = vmatmul.mubr.bf16.gmra.mxu0 %v873
    %v1040 = vpop.f32.mrf.mxu0
    %v1041 = vadd.f32 %v900, %v1040
    %v1042 = vpop.f32.mrf.mxu0
    %v1043 = vpop.f32.mrf.mxu0
    %v1044 = vadd.f32 %v900, %v1043
    %v1045 = vpop.f32.mrf.mxu0
    %1046 = vmatprep.mubr.bf16.mxu0 0
    %1047 = vmatmul.mubr.bf16.gmra.mxu0 %v874
    %v1048 = vpop.f32.mrf.mxu0
    %v1049 = vadd.f32 %v900, %v1048
    %v1050 = vpop.f32.mrf.mxu0
    %v1051 = vpop.f32.mrf.mxu0
    %v1052 = vadd.f32 %v900, %v1051
    %v1053 = vpop.f32.mrf.mxu0
    %1054 = vmatprep.mubr.bf16.mxu0 0
    %1055 = vmatmul.mubr.bf16.gmra.mxu0 %v875
    %v1056 = vpop.f32.mrf.mxu0
    %v1057 = vadd.f32 %v900, %v1056
    %v1058 = vpop.f32.mrf.mxu0
    %v1059 = vpop.f32.mrf.mxu0
    %v1060 = vadd.f32 %v900, %v1059
    %v1061 = vpop.f32.mrf.mxu0
    %1062 = vmatprep.mubr.bf16.mxu0 0
    %1063 = vmatmul.mubr.bf16.gmra.mxu0 %v876
    %v1064 = vpop.f32.mrf.mxu0
    %v1065 = vadd.f32 %v900, %v1064
    %v1066 = vpop.f32.mrf.mxu0
    %v1067 = vpop.f32.mrf.mxu0
    %v1068 = vadd.f32 %v900, %v1067
    %v1069 = vpop.f32.mrf.mxu0
    %1070 = vmatprep.mubr.bf16.mxu0 0
    %1071 = vmatmul.mubr.bf16.gmra.mxu0 %v877
    %v1072 = vpop.f32.mrf.mxu0
    %v1073 = vadd.f32 %v900, %v1072
    %v1074 = vpop.f32.mrf.mxu0
    %v1075 = vpop.f32.mrf.mxu0
    %v1076 = vadd.f32 %v900, %v1075
    %v1077 = vpop.f32.mrf.mxu0
    %1078 = vmatprep.mubr.bf16.mxu0 0
    %1079 = vmatmul.mubr.bf16.gmra.mxu0 %v878
    %v1080 = vpop.f32.mrf.mxu0
    %v1081 = vadd.f32 %v900, %v1080
    %v1082 = vpop.f32.mrf.mxu0
    %v1083 = vpop.f32.mrf.mxu0
    %v1084 = vadd.f32 %v900, %v1083
    %v1085 = vpop.f32.mrf.mxu0
    %1086 = vdwg.mxu0
    %1087 = vst [vmem:[#allocation2] sm:$0xff] %v985
    %1088 = vst [vmem:[#allocation2 + $0x8] sm:$0xff] %v988
    %1089 = vst [vmem:[#allocation2 + $0x10] sm:$0xff] %v993
    %1090 = vst [vmem:[#allocation2 + $0x18] sm:$0xff] %v996
    %1091 = vst [vmem:[#allocation2 + $0x20] sm:$0xff] %v1001
    %1092 = vst [vmem:[#allocation2 + $0x28] sm:$0xff] %v1004
    %1093 = vst [vmem:[#allocation2 + $0x30] sm:$0xff] %v1009
    %1094 = vst [vmem:[#allocation2 + $0x38] sm:$0xff] %v1012
    %1095 = vst [vmem:[#allocation2 + $0x40] sm:$0xff] %v1017
    %1096 = vst [vmem:[#allocation2 + $0x48] sm:$0xff] %v1020
    %1097 = vst [vmem:[#allocation2 + $0x50] sm:$0xff] %v1025
    %1098 = vst [vmem:[#allocation2 + $0x58] sm:$0xff] %v1028
    %1099 = vst [vmem:[#allocation2 + $0x60] sm:$0xff] %v1033
    %1100 = vst [vmem:[#allocation2 + $0x68] sm:$0xff] %v1036
    %1101 = vst [vmem:[#allocation2 + $0x70] sm:$0xff] %v1041
    %1102 = vst [vmem:[#allocation2 + $0x78] sm:$0xff] %v1044
    %1103 = vst [vmem:[#allocation2 + $0x80] sm:$0xff] %v1049
    %1104 = vst [vmem:[#allocation2 + $0x88] sm:$0xff] %v1052
    %1105 = vst [vmem:[#allocation2 + $0x90] sm:$0xff] %v1057
    %1106 = vst [vmem:[#allocation2 + $0x98] sm:$0xff] %v1060
    %1107 = vst [vmem:[#allocation2 + $0xa0] sm:$0xff] %v1065
    %1108 = vst [vmem:[#allocation2 + $0xa8] sm:$0xff] %v1068
    %1109 = vst [vmem:[#allocation2 + $0xb0] sm:$0xff] %v1073
    %1110 = vst [vmem:[#allocation2 + $0xb8] sm:$0xff] %v1076
    %1111 = vst [vmem:[#allocation2 + $0xc0] sm:$0xff] %v1081
    %1112 = vst [vmem:[#allocation2 + $0xc8] sm:$0xff] %v1084
    // Predicated region
    $region38: #{tpu_custom_call.1} parent=1 // pred_check
      _
    $region39: #{tpu_custom_call.1} parent=1 // pred_check_branch
      %1114 = sbr.rel (0) target = $region41
    $region40: #{tpu_custom_call.1} parent=1 // pred_region
      %s1116 = ssub.s32 3328, 3328
      %1117 = vsyncadd [#allocation3], %s1116
      %s1118 = sshll.u32 [#allocation2], 4
      %s1119 = int_to_ptr.vmem [resolvable:$true] %s1118
      %1124 = dma.vmem_to_hbm [thread:$0]  %s1119, 3328, %s9, [#allocation3], 128, 128, 8
    $region41: #{tpu_custom_call.1} parent=1 // pred_fallthru
      _
    // Predicated region
    $region42: #{tpu_custom_call.1} parent=1 // pred_check
      _
    $region43: #{tpu_custom_call.1} parent=1 // pred_check_branch
      %1126 = sbr.rel (0) target = $region45
    $region44: #{tpu_custom_call.1} parent=1 // pred_region
      %1127 = dma.done [#allocation3], 3328
    $region45: #{tpu_custom_call.1} parent=1 // pred_fallthru
      _
    %1128 = vsyncpa [#allocation3], 1

</llo_original>
